<compile_context>
chip_gen: v5e
topology: v5e:2x2
jax: 0.10.0
libtpu: 0.0.40
codegen_flags: <defaults>
</compile_context>

<pallas_src>
import functools

import jax
import jax.numpy as jnp
import numpy as np
from jax.experimental import pallas as pl
from jax.experimental.pallas import tpu as pltpu


# ----------------------------------------------------------------------------
# Pallas kernel: one grid step == one FPN level (all batches, all 3 convs)
# ----------------------------------------------------------------------------
def _reg_head_kernel(feat_ref, mask_ref, w1_ref, b1_ref, w2_ref, b2_ref,
                     w3_ref, b3_ref, out_ref, *, t_pad):
    n = feat_ref.shape[1]                                   # rows = B * t_pad
    rows = jax.lax.broadcasted_iota(jnp.int32, (n, 1), 0)
    is_first = (rows % t_pad) == 0                          # t == 0 of a (level,batch) segment
    is_last = (rows % t_pad) == (t_pad - 1)                 # t == t_pad-1 of a segment

    def conv_k3(x, w_cat, bias, cout):
        # x: (n, cin); w_cat = [W0 | W1 | W2]: (cin, 3*cout)
        # out[t] = W0 @ x[t-1] + W1 @ x[t] + W2 @ x[t+1] + b   (zero-padded per segment)
        y = jnp.dot(x, w_cat, preferred_element_type=jnp.float32)
        prev = pltpu.roll(y[:, :cout], shift=1, axis=0)         # (x @ W0)[t-1]
        nxt = pltpu.roll(y[:, 2 * cout:], shift=n - 1, axis=0)  # (x @ W2)[t+1]
        prev = jnp.where(is_first, 0.0, prev)                   # kill cross-segment leak
        nxt = jnp.where(is_last, 0.0, nxt)
        return prev + y[:, cout:2 * cout] + nxt + bias

    x = feat_ref[0]                       # (n, Cin)
    m = mask_ref[0]                       # (n, 1)
    cf = b1_ref.shape[-1]

    h = jnp.maximum(conv_k3(x, w1_ref[...], b1_ref[...], cf) * m, 0.0)
    h = jnp.maximum(conv_k3(h, w2_ref[...], b2_ref[...], cf) * m, 0.0)
    # The per-level Scale() is already folded into w3/b3 by the wrapper.
    o = conv_k3(h, w3_ref[0], b3_ref[0], 2) * m
    # TODO(synk): at realistic ActionFormer sizes stage the store lane-dense
    # (e.g. a (2, B*T) layout) instead of a 2-lane masked vst.
    out_ref[0] = jnp.maximum(o, 0.0)


# ----------------------------------------------------------------------------
# Wrapper: stack levels, fuse taps/scale into weights, single pallas_call
# ----------------------------------------------------------------------------
def reg_head_forward(fpn_feats, fpn_masks, params, scales):
    """Equivalent of PtTransformerRegHead.forward (with_ln=False, num_layers=3)."""
    assert len(fpn_feats) == len(fpn_masks) == len(scales)
    num_levels = len(fpn_feats)
    B, _, c_in = fpn_feats[0].shape
    c_f = params["w1"].shape[-1]
    t_lens = [int(f.shape[1]) for f in fpn_feats]
    t_pad = -(-max(t_lens) // 8) * 8          # sublane-aligned common time length
    n_rows = B * t_pad

    # Stack levels: pad time to t_pad, flatten (batch, time) -> matmul rows.
    feat_stk = jnp.stack(
        [jnp.pad(f, ((0, 0), (0, t_pad - t), (0, 0)))
         for f, t in zip(fpn_feats, t_lens)]).reshape(num_levels, n_rows, c_in)
    mask_stk = jnp.stack(
        [jnp.pad(m.astype(jnp.float32), ((0, 0), (0, t_pad - t), (0, 0)))
         for m, t in zip(fpn_masks, t_lens)]).reshape(num_levels, n_rows, 1)

    # Fuse the 3 taps of each conv into one operand: [W0 | W1 | W2].
    w1c = jnp.concatenate([params["w1"][k] for k in range(3)], axis=-1)   # (Cin, 3*Cf)
    w2c = jnp.concatenate([params["w2"][k] for k in range(3)], axis=-1)   # (Cf, 3*Cf)
    w3c = jnp.concatenate([params["w3"][k] for k in range(3)], axis=-1)   # (Cf, 6)
    # Fold Scale() into the offset head: relu(s*(conv(h)+b)*m) == relu(((s*W)conv(h)+s*b)*m).
    scale_arr = jnp.stack([jnp.asarray(s, jnp.float32) for s in scales])  # (L,)
    w3c_lvl = scale_arr[:, None, None] * w3c[None]                        # (L, Cf, 6)
    b3_lvl = scale_arr[:, None, None] * params["b3"][None]                # (L, 1, 2)
    b1, b2 = params["b1"], params["b2"]

    flops = 2 * num_levels * n_rows * (c_in * 3 * c_f + c_f * 3 * c_f + c_f * 6)
    bytes_accessed = sum(int(np.prod(a.shape)) * 4 for a in
                         (feat_stk, mask_stk, w1c, b1, w2c, b2, w3c_lvl, b3_lvl))
    bytes_accessed += num_levels * n_rows * 2 * 4

    grid_spec = pltpu.PrefetchScalarGridSpec(
        num_scalar_prefetch=0,
        grid=(num_levels,),
        in_specs=[
            pl.BlockSpec((1, n_rows, c_in), lambda l: (l, 0, 0)),  # features (per level)
            pl.BlockSpec((1, n_rows, 1), lambda l: (l, 0, 0)),     # mask     (per level)
            pl.BlockSpec((c_in, 3 * c_f), lambda l: (0, 0)),       # conv1 W_cat (shared)
            pl.BlockSpec((1, c_f), lambda l: (0, 0)),              # conv1 bias
            pl.BlockSpec((c_f, 3 * c_f), lambda l: (0, 0)),        # conv2 W_cat (shared)
            pl.BlockSpec((1, c_f), lambda l: (0, 0)),              # conv2 bias
            pl.BlockSpec((1, c_f, 6), lambda l: (l, 0, 0)),        # conv3 W_cat * scale_l
            pl.BlockSpec((1, 1, 2), lambda l: (l, 0, 0)),          # conv3 bias  * scale_l
        ],
        out_specs=pl.BlockSpec((1, n_rows, 2), lambda l: (l, 0, 0)),
    )

    # TODO(synk): for real ActionFormer shapes (T~2304, C=512, 6 levels) tile the
    # row axis with a +/-1 halo instead of whole-level VMEM residency.
    out = pl.pallas_call(
        functools.partial(_reg_head_kernel, t_pad=t_pad),
        out_shape=jax.ShapeDtypeStruct((num_levels, n_rows, 2), jnp.float32),
        grid_spec=grid_spec,
        compiler_params=pltpu.CompilerParams(dimension_semantics=("parallel",)),
        cost_estimate=pl.CostEstimate(flops=flops, transcendentals=0,
                                      bytes_accessed=bytes_accessed),
    )(feat_stk, mask_stk, w1c, b1, w2c, b2, w3c_lvl, b3_lvl)

    out = out.reshape(num_levels, B, t_pad, 2)
    return tuple(out[l, :, :t_lens[l], :] for l in range(num_levels))


# ----------------------------------------------------------------------------
# Pure-JAX reference (for correctness check only)
# ----------------------------------------------------------------------------
def _conv1d_ref(x, w, b):
    T = x.shape[1]
    xp = jnp.pad(x, ((0, 0), (1, 1), (0, 0)))
    out = sum(jnp.einsum("btc,cd->btd", xp[:, k:k + T], w[k],
                         precision=jax.lax.Precision.HIGHEST)
              for k in range(3))
    return out + b[None]


def _reg_head_ref(feat, mask, p, scale):
    h = jax.nn.relu(_conv1d_ref(feat, p["w1"], p["b1"]) * mask)
    h = jax.nn.relu(_conv1d_ref(h, p["w2"], p["b2"]) * mask)
    o = _conv1d_ref(h, p["w3"], p["b3"]) * mask
    return jax.nn.relu(o * scale)


# ----------------------------------------------------------------------------
# Main
# ----------------------------------------------------------------------------
if __name__ == "__main__":
    B = 2
    input_dim = 32     # C_in
    feat_dim = 32      # hidden
    fpn_levels = 2
    Ts = [16, 8]       # temporal length halves per FPN level

    key = jax.random.PRNGKey(0)
    ks = jax.random.split(key, 12)

    # Deterministic parameter init (shapes follow the module's __init__;
    # kernel_size=3, num_layers=3, with_ln=False -> all convs carry a bias).
    params = {
        "w1": (0.1 * jax.random.normal(ks[0], (3, input_dim, feat_dim))).astype(jnp.float32),
        "b1": (0.05 * jax.random.normal(ks[1], (1, feat_dim))).astype(jnp.float32),
        "w2": (0.1 * jax.random.normal(ks[2], (3, feat_dim, feat_dim))).astype(jnp.float32),
        "b2": (0.05 * jax.random.normal(ks[3], (1, feat_dim))).astype(jnp.float32),
        "w3": (0.1 * jax.random.normal(ks[4], (3, feat_dim, 2))).astype(jnp.float32),
        "b3": (0.05 * jax.random.normal(ks[5], (1, 2))).astype(jnp.float32),
    }
    scales = [jnp.float32(1.0 + 0.5 * l) for l in range(fpn_levels)]  # Scale() per level

    # Inputs: one feature / mask per FPN level.
    fpn_feats, fpn_masks = [], []
    valid_lens = [[16, 11], [8, 5]]
    for l, T in enumerate(Ts):
        feat = jax.random.normal(ks[6 + l], (B, T, input_dim)).astype(jnp.float32)
        t_idx = jnp.arange(T)[None, :]
        mask = (t_idx < jnp.asarray(valid_lens[l])[:, None]).astype(jnp.float32)[..., None]  # (B,T,1)
        fpn_feats.append(feat)
        fpn_masks.append(mask)

    outs = reg_head_forward(fpn_feats, fpn_masks, params, scales)
    outs = jax.block_until_ready(outs)

    # Sanity check against the pure-JAX reference.
    for l in range(fpn_levels):
        ref = _reg_head_ref(fpn_feats[l], fpn_masks[l], params, scales[l])
        np.testing.assert_allclose(np.asarray(outs[l]), np.asarray(ref),
                                   rtol=1e-2, atol=1e-2)
        assert outs[l].shape == (B, Ts[l], 2)

    print("KERNEL_OK")
</pallas_src>

<mosaic_0001>
module attributes {stable_mosaic.version = 11 : i64} {
  func.func @_reg_head_kernel(%arg0: i32, %arg1: memref<1x32x32xf32, #tpu.memory_space<vmem>>, %arg2: memref<1x32x1xf32, #tpu.memory_space<vmem>>, %arg3: memref<32x96xf32, #tpu.memory_space<vmem>>, %arg4: memref<1x32xf32, #tpu.memory_space<vmem>>, %arg5: memref<32x96xf32, #tpu.memory_space<vmem>>, %arg6: memref<1x32xf32, #tpu.memory_space<vmem>>, %arg7: memref<1x32x6xf32, #tpu.memory_space<vmem>>, %arg8: memref<1x1x2xf32, #tpu.memory_space<vmem>>, %arg9: memref<1x32x2xf32, #tpu.memory_space<vmem>>) attributes {dimension_semantics = [#tpu.dimension_semantics<parallel>], iteration_bounds = array<i64: 2>, scalar_prefetch = 0 : i64, scratch_operands = 0 : i64, tpu.core_type = #tpu.core_type<tc>, window_params = [{transform_indices = @transform_0, window_bounds = array<i64: 1, 32, 32>}, {transform_indices = @transform_1, window_bounds = array<i64: 1, 32, 1>}, {pipeline_mode = #tpu.pipeline_mode<synchronous>, transform_indices = @transform_2, window_bounds = array<i64: 32, 96>}, {pipeline_mode = #tpu.pipeline_mode<synchronous>, transform_indices = @transform_3, window_bounds = array<i64: 1, 32>}, {pipeline_mode = #tpu.pipeline_mode<synchronous>, transform_indices = @transform_4, window_bounds = array<i64: 32, 96>}, {pipeline_mode = #tpu.pipeline_mode<synchronous>, transform_indices = @transform_5, window_bounds = array<i64: 1, 32>}, {transform_indices = @transform_6, window_bounds = array<i64: 1, 32, 6>}, {transform_indices = @transform_7, window_bounds = array<i64: 1, 1, 2>}, {transform_indices = @transform_8, window_bounds = array<i64: 1, 32, 2>}]} {
    %0 = tpu.iota {dimensions = array<i32: 0>} : vector<32x1xi32>
    %c16_i32 = arith.constant 16 : i32
    %c0_i32 = arith.constant 0 : i32
    %1 = arith.cmpi eq, %c16_i32, %c0_i32 : i32
    %c1_i32 = arith.constant 1 : i32
    %2 = arith.select %1, %c1_i32, %c16_i32 : i32
    %3 = vector.broadcast %2 : i32 to vector<32x1xi32>
    %4 = arith.remsi %0, %3 : vector<32x1xi32>
    %c0_i32_0 = arith.constant 0 : i32
    %5 = vector.broadcast %c0_i32_0 : i32 to vector<32x1xi32>
    %6 = arith.cmpi ne, %4, %5 : vector<32x1xi32>
    %c0_i32_1 = arith.constant 0 : i32
    %7 = vector.broadcast %c0_i32_1 : i32 to vector<32x1xi32>
    %8 = arith.cmpi slt, %4, %7 : vector<32x1xi32>
    %c0_i32_2 = arith.constant 0 : i32
    %9 = arith.cmpi slt, %2, %c0_i32_2 : i32
    %10 = vector.broadcast %9 : i1 to vector<32x1xi1>
    %11 = vector.broadcast %10 : vector<32x1xi1> to vector<32x1xi1>
    %12 = arith.xori %8, %11 : vector<32x1xi1>
    %13 = arith.andi %12, %6 : vector<32x1xi1>
    %14 = vector.broadcast %2 : i32 to vector<32x1xi32>
    %15 = arith.addi %4, %14 : vector<32x1xi32>
    %16 = arith.select %13, %15, %4 : vector<32x1xi1>, vector<32x1xi32>
    %c0_i32_3 = arith.constant 0 : i32
    %17 = vector.broadcast %c0_i32_3 : i32 to vector<32x1xi32>
    %18 = arith.cmpi eq, %16, %17 : vector<32x1xi32>
    %c16_i32_4 = arith.constant 16 : i32
    %c0_i32_5 = arith.constant 0 : i32
    %19 = arith.cmpi eq, %c16_i32_4, %c0_i32_5 : i32
    %c1_i32_6 = arith.constant 1 : i32
    %20 = arith.select %19, %c1_i32_6, %c16_i32_4 : i32
    %21 = vector.broadcast %20 : i32 to vector<32x1xi32>
    %22 = arith.remsi %0, %21 : vector<32x1xi32>
    %c0_i32_7 = arith.constant 0 : i32
    %23 = vector.broadcast %c0_i32_7 : i32 to vector<32x1xi32>
    %24 = arith.cmpi ne, %22, %23 : vector<32x1xi32>
    %c0_i32_8 = arith.constant 0 : i32
    %25 = vector.broadcast %c0_i32_8 : i32 to vector<32x1xi32>
    %26 = arith.cmpi slt, %22, %25 : vector<32x1xi32>
    %c0_i32_9 = arith.constant 0 : i32
    %27 = arith.cmpi slt, %20, %c0_i32_9 : i32
    %28 = vector.broadcast %27 : i1 to vector<32x1xi1>
    %29 = vector.broadcast %28 : vector<32x1xi1> to vector<32x1xi1>
    %30 = arith.xori %26, %29 : vector<32x1xi1>
    %31 = arith.andi %30, %24 : vector<32x1xi1>
    %32 = vector.broadcast %20 : i32 to vector<32x1xi32>
    %33 = arith.addi %22, %32 : vector<32x1xi32>
    %34 = arith.select %31, %33, %22 : vector<32x1xi1>, vector<32x1xi32>
    %c15_i32 = arith.constant 15 : i32
    %35 = vector.broadcast %c15_i32 : i32 to vector<32x1xi32>
    %36 = arith.cmpi eq, %34, %35 : vector<32x1xi32>
    %c0 = arith.constant 0 : index
    %c0_10 = arith.constant 0 : index
    %c0_11 = arith.constant 0 : index
    %37 = vector.load %arg1[%c0, %c0_10, %c0_11] : memref<1x32x32xf32, #tpu.memory_space<vmem>>, vector<1x32x32xf32>
    %38 = vector.shape_cast %37 : vector<1x32x32xf32> to vector<32x32xf32>
    %c0_12 = arith.constant 0 : index
    %c0_13 = arith.constant 0 : index
    %c0_14 = arith.constant 0 : index
    %39 = vector.load %arg2[%c0_12, %c0_13, %c0_14] : memref<1x32x1xf32, #tpu.memory_space<vmem>>, vector<1x32x1xf32>
    %40 = vector.shape_cast %39 : vector<1x32x1xf32> to vector<32x1xf32>
    %c0_15 = arith.constant 0 : index
    %c0_16 = arith.constant 0 : index
    %41 = vector.load %arg3[%c0_15, %c0_16] : memref<32x96xf32, #tpu.memory_space<vmem>>, vector<32x96xf32>
    %c0_17 = arith.constant 0 : index
    %c0_18 = arith.constant 0 : index
    %42 = vector.load %arg4[%c0_17, %c0_18] : memref<1x32xf32, #tpu.memory_space<vmem>>, vector<1x32xf32>
    %cst = arith.constant dense<0.000000e+00> : vector<32x96xf32>
    %43 = tpu.matmul %38, %41, %cst {dimension_numbers = #tpu.dot_dimension_numbers<[1], [0], [0], [1], [0, 0, 1, 1], [], []>} : vector<32x32xf32>, vector<32x96xf32>, vector<32x96xf32> -> vector<32x96xf32>
    %44 = vector.extract_strided_slice %43 {offsets = [0, 0], sizes = [32, 32], strides = [1, 1]} : vector<32x96xf32> to vector<32x32xf32>
    %c1_i32_19 = arith.constant 1 : i32
    %45 = tpu.dynamic_rotate %44 by %c1_i32_19 dim 0 : vector<32x32xf32>, i32 -> vector<32x32xf32>
    %46 = vector.extract_strided_slice %43 {offsets = [0, 64], sizes = [32, 32], strides = [1, 1]} : vector<32x96xf32> to vector<32x32xf32>
    %c31_i32 = arith.constant 31 : i32
    %47 = tpu.dynamic_rotate %46 by %c31_i32 dim 0 : vector<32x32xf32>, i32 -> vector<32x32xf32>
    %cst_20 = arith.constant 0.000000e+00 : f32
    %48 = vector.shape_cast %18 : vector<32x1xi1> to vector<32x1xi1>
    %49 = vector.broadcast %48 : vector<32x1xi1> to vector<32x32xi1>
    %50 = vector.broadcast %cst_20 : f32 to vector<32x32xf32>
    %51 = arith.select %49, %50, %45 : vector<32x32xi1>, vector<32x32xf32>
    %cst_21 = arith.constant 0.000000e+00 : f32
    %52 = vector.shape_cast %36 : vector<32x1xi1> to vector<32x1xi1>
    %53 = vector.broadcast %52 : vector<32x1xi1> to vector<32x32xi1>
    %54 = vector.broadcast %cst_21 : f32 to vector<32x32xf32>
    %55 = arith.select %53, %54, %47 : vector<32x32xi1>, vector<32x32xf32>
    %56 = vector.extract_strided_slice %43 {offsets = [0, 32], sizes = [32, 32], strides = [1, 1]} : vector<32x96xf32> to vector<32x32xf32>
    %57 = arith.addf %51, %56 : vector<32x32xf32>
    %58 = arith.addf %57, %55 : vector<32x32xf32>
    %59 = vector.broadcast %42 : vector<1x32xf32> to vector<32x32xf32>
    %60 = arith.addf %58, %59 : vector<32x32xf32>
    %61 = vector.broadcast %40 : vector<32x1xf32> to vector<32x32xf32>
    %62 = arith.mulf %60, %61 : vector<32x32xf32>
    %cst_22 = arith.constant 0.000000e+00 : f32
    %63 = vector.broadcast %cst_22 : f32 to vector<32x32xf32>
    %64 = arith.maximumf %62, %63 : vector<32x32xf32>
    %c0_23 = arith.constant 0 : index
    %c0_24 = arith.constant 0 : index
    %65 = vector.load %arg5[%c0_23, %c0_24] : memref<32x96xf32, #tpu.memory_space<vmem>>, vector<32x96xf32>
    %c0_25 = arith.constant 0 : index
    %c0_26 = arith.constant 0 : index
    %66 = vector.load %arg6[%c0_25, %c0_26] : memref<1x32xf32, #tpu.memory_space<vmem>>, vector<1x32xf32>
    %cst_27 = arith.constant dense<0.000000e+00> : vector<32x96xf32>
    %67 = tpu.matmul %64, %65, %cst_27 {dimension_numbers = #tpu.dot_dimension_numbers<[1], [0], [0], [1], [0, 0, 1, 1], [], []>} : vector<32x32xf32>, vector<32x96xf32>, vector<32x96xf32> -> vector<32x96xf32>
    %68 = vector.extract_strided_slice %67 {offsets = [0, 0], sizes = [32, 32], strides = [1, 1]} : vector<32x96xf32> to vector<32x32xf32>
    %c1_i32_28 = arith.constant 1 : i32
    %69 = tpu.dynamic_rotate %68 by %c1_i32_28 dim 0 : vector<32x32xf32>, i32 -> vector<32x32xf32>
    %70 = vector.extract_strided_slice %67 {offsets = [0, 64], sizes = [32, 32], strides = [1, 1]} : vector<32x96xf32> to vector<32x32xf32>
    %c31_i32_29 = arith.constant 31 : i32
    %71 = tpu.dynamic_rotate %70 by %c31_i32_29 dim 0 : vector<32x32xf32>, i32 -> vector<32x32xf32>
    %cst_30 = arith.constant 0.000000e+00 : f32
    %72 = vector.shape_cast %18 : vector<32x1xi1> to vector<32x1xi1>
    %73 = vector.broadcast %72 : vector<32x1xi1> to vector<32x32xi1>
    %74 = vector.broadcast %cst_30 : f32 to vector<32x32xf32>
    %75 = arith.select %73, %74, %69 : vector<32x32xi1>, vector<32x32xf32>
    %cst_31 = arith.constant 0.000000e+00 : f32
    %76 = vector.shape_cast %36 : vector<32x1xi1> to vector<32x1xi1>
    %77 = vector.broadcast %76 : vector<32x1xi1> to vector<32x32xi1>
    %78 = vector.broadcast %cst_31 : f32 to vector<32x32xf32>
    %79 = arith.select %77, %78, %71 : vector<32x32xi1>, vector<32x32xf32>
    %80 = vector.extract_strided_slice %67 {offsets = [0, 32], sizes = [32, 32], strides = [1, 1]} : vector<32x96xf32> to vector<32x32xf32>
    %81 = arith.addf %75, %80 : vector<32x32xf32>
    %82 = arith.addf %81, %79 : vector<32x32xf32>
    %83 = vector.broadcast %66 : vector<1x32xf32> to vector<32x32xf32>
    %84 = arith.addf %82, %83 : vector<32x32xf32>
    %85 = vector.broadcast %40 : vector<32x1xf32> to vector<32x32xf32>
    %86 = arith.mulf %84, %85 : vector<32x32xf32>
    %cst_32 = arith.constant 0.000000e+00 : f32
    %87 = vector.broadcast %cst_32 : f32 to vector<32x32xf32>
    %88 = arith.maximumf %86, %87 : vector<32x32xf32>
    %c0_33 = arith.constant 0 : index
    %c0_34 = arith.constant 0 : index
    %c0_35 = arith.constant 0 : index
    %89 = vector.load %arg7[%c0_33, %c0_34, %c0_35] : memref<1x32x6xf32, #tpu.memory_space<vmem>>, vector<1x32x6xf32>
    %90 = vector.shape_cast %89 : vector<1x32x6xf32> to vector<32x6xf32>
    %c0_36 = arith.constant 0 : index
    %c0_37 = arith.constant 0 : index
    %c0_38 = arith.constant 0 : index
    %91 = vector.load %arg8[%c0_36, %c0_37, %c0_38] : memref<1x1x2xf32, #tpu.memory_space<vmem>>, vector<1x1x2xf32>
    %92 = vector.shape_cast %91 : vector<1x1x2xf32> to vector<1x2xf32>
    %cst_39 = arith.constant dense<0.000000e+00> : vector<32x6xf32>
    %93 = tpu.matmul %88, %90, %cst_39 {dimension_numbers = #tpu.dot_dimension_numbers<[1], [0], [0], [1], [0, 0, 1, 1], [], []>} : vector<32x32xf32>, vector<32x6xf32>, vector<32x6xf32> -> vector<32x6xf32>
    %94 = vector.extract_strided_slice %93 {offsets = [0, 0], sizes = [32, 2], strides = [1, 1]} : vector<32x6xf32> to vector<32x2xf32>
    %c1_i32_40 = arith.constant 1 : i32
    %95 = tpu.dynamic_rotate %94 by %c1_i32_40 dim 0 : vector<32x2xf32>, i32 -> vector<32x2xf32>
    %96 = vector.extract_strided_slice %93 {offsets = [0, 4], sizes = [32, 2], strides = [1, 1]} : vector<32x6xf32> to vector<32x2xf32>
    %c31_i32_41 = arith.constant 31 : i32
    %97 = tpu.dynamic_rotate %96 by %c31_i32_41 dim 0 : vector<32x2xf32>, i32 -> vector<32x2xf32>
    %cst_42 = arith.constant 0.000000e+00 : f32
    %98 = vector.shape_cast %18 : vector<32x1xi1> to vector<32x1xi1>
    %99 = vector.broadcast %98 : vector<32x1xi1> to vector<32x2xi1>
    %100 = vector.broadcast %cst_42 : f32 to vector<32x2xf32>
    %101 = arith.select %99, %100, %95 : vector<32x2xi1>, vector<32x2xf32>
    %cst_43 = arith.constant 0.000000e+00 : f32
    %102 = vector.shape_cast %36 : vector<32x1xi1> to vector<32x1xi1>
    %103 = vector.broadcast %102 : vector<32x1xi1> to vector<32x2xi1>
    %104 = vector.broadcast %cst_43 : f32 to vector<32x2xf32>
    %105 = arith.select %103, %104, %97 : vector<32x2xi1>, vector<32x2xf32>
    %106 = vector.extract_strided_slice %93 {offsets = [0, 2], sizes = [32, 2], strides = [1, 1]} : vector<32x6xf32> to vector<32x2xf32>
    %107 = arith.addf %101, %106 : vector<32x2xf32>
    %108 = arith.addf %107, %105 : vector<32x2xf32>
    %109 = vector.broadcast %92 : vector<1x2xf32> to vector<32x2xf32>
    %110 = arith.addf %108, %109 : vector<32x2xf32>
    %111 = vector.broadcast %40 : vector<32x1xf32> to vector<32x2xf32>
    %112 = arith.mulf %110, %111 : vector<32x2xf32>
    %cst_44 = arith.constant 0.000000e+00 : f32
    %113 = vector.broadcast %cst_44 : f32 to vector<32x2xf32>
    %114 = arith.maximumf %112, %113 : vector<32x2xf32>
    %c0_45 = arith.constant 0 : index
    %c0_46 = arith.constant 0 : index
    %c0_47 = arith.constant 0 : index
    %115 = vector.load %arg9[%c0_45, %c0_46, %c0_47] : memref<1x32x2xf32, #tpu.memory_space<vmem>>, vector<1x32x2xf32>
    %116 = vector.shape_cast %115 : vector<1x32x2xf32> to vector<32x2xf32>
    %117 = vector.shape_cast %114 : vector<32x2xf32> to vector<1x32x2xf32>
    tpu.vector_store %arg9[%c0_45, %c0_46, %c0_47], %117 {strides = array<i32>} : memref<1x32x2xf32, #tpu.memory_space<vmem>>, vector<1x32x2xf32>,
    return
  }
  func.func @transform_0(%arg0: i32) -> (i32, i32, i32) {
    %c0_i32 = arith.constant 0 : i32
    %c0_i32_0 = arith.constant 0 : i32
    %c0_i32_1 = arith.constant 0 : i32
    return %arg0, %c0_i32, %c0_i32_0 : i32, i32, i32
  }
  func.func @transform_1(%arg0: i32) -> (i32, i32, i32) {
    %c0_i32 = arith.constant 0 : i32
    %c0_i32_0 = arith.constant 0 : i32
    %c0_i32_1 = arith.constant 0 : i32
    return %arg0, %c0_i32, %c0_i32_0 : i32, i32, i32
  }
  func.func @transform_2(%arg0: i32) -> (i32, i32) {
    %c0_i32 = arith.constant 0 : i32
    %c0_i32_0 = arith.constant 0 : i32
    %c0_i32_1 = arith.constant 0 : i32
    return %c0_i32, %c0_i32_0 : i32, i32
  }
  func.func @transform_3(%arg0: i32) -> (i32, i32) {
    %c0_i32 = arith.constant 0 : i32
    %c0_i32_0 = arith.constant 0 : i32
    %c0_i32_1 = arith.constant 0 : i32
    return %c0_i32, %c0_i32_0 : i32, i32
  }
  func.func @transform_4(%arg0: i32) -> (i32, i32) {
    %c0_i32 = arith.constant 0 : i32
    %c0_i32_0 = arith.constant 0 : i32
    %c0_i32_1 = arith.constant 0 : i32
    return %c0_i32, %c0_i32_0 : i32, i32
  }
  func.func @transform_5(%arg0: i32) -> (i32, i32) {
    %c0_i32 = arith.constant 0 : i32
    %c0_i32_0 = arith.constant 0 : i32
    %c0_i32_1 = arith.constant 0 : i32
    return %c0_i32, %c0_i32_0 : i32, i32
  }
  func.func @transform_6(%arg0: i32) -> (i32, i32, i32) {
    %c0_i32 = arith.constant 0 : i32
    %c0_i32_0 = arith.constant 0 : i32
    %c0_i32_1 = arith.constant 0 : i32
    return %arg0, %c0_i32, %c0_i32_0 : i32, i32, i32
  }
  func.func @transform_7(%arg0: i32) -> (i32, i32, i32) {
    %c0_i32 = arith.constant 0 : i32
    %c0_i32_0 = arith.constant 0 : i32
    %c0_i32_1 = arith.constant 0 : i32
    return %arg0, %c0_i32, %c0_i32_0 : i32, i32, i32
  }
  func.func @transform_8(%arg0: i32) -> (i32, i32, i32) {
    %c0_i32 = arith.constant 0 : i32
    %c0_i32_0 = arith.constant 0 : i32
    %c0_i32_1 = arith.constant 0 : i32
    return %arg0, %c0_i32, %c0_i32_0 : i32, i32, i32
  }
}

</mosaic_0001>

<llo_original>
// kernel: tpu_custom_call.1
$region0: #{tpu_custom_call.1}
  #allocation0 [shape = 'u32[]', space=smem, size = 0x4, offset = 0x4, fixed_abs, tag = 'smem constant byte address 0x4 - core index']
  #allocation1 [shape = 'u32[72,128]{1,0:T(1,128)}', space=vmem, size = 0x9000, scoped, tag = 'internal scratch']
  %s0 = inlined_call_operand.vmem [shape: f32[2,32,32], index: 0, kind: input, shape index: {}]
  %s1 = inlined_call_operand.vmem [shape: f32[2,32,1], index: 1, kind: input, shape index: {}]
  %s2 = inlined_call_operand.vmem [shape: f32[32,96], index: 2, kind: input, shape index: {}]
  %s3 = inlined_call_operand.vmem [shape: f32[1,32], index: 3, kind: input, shape index: {}]
  %s4 = inlined_call_operand.vmem [shape: f32[32,96], index: 4, kind: input, shape index: {}]
  %s5 = inlined_call_operand.vmem [shape: f32[1,32], index: 5, kind: input, shape index: {}]
  %s6 = inlined_call_operand.vmem [shape: f32[2,32,6], index: 6, kind: input, shape index: {}]
  %s7 = inlined_call_operand.vmem [shape: f32[2,1,2], index: 7, kind: input, shape index: {}]
  %s8 = inlined_call_operand.vmem [shape: f32[2,32,2], index: 8, kind: output, shape index: {}]
  %s9 = sld [smem:[#allocation0]]
  $region65: #{tpu_custom_call.1} parent=0
    _
  %s11 = ssub.s32 1, %s9
  %s12 = scalar_select 0, %s11, %s9
  loop: start=0, step=1, limit=4
  $region2: #{tpu_custom_call.1} parent=0 // loop_pre_header
    _
  $region3: #{tpu_custom_call.1} parent=0 // loop_header
    %s14 = sphi 0, %s18
    %p15 = scmp.ge.s32.totalorder %s14, 4
    %s24 = sphi 0, %s26
    %s27 = sphi 0, %s24
    %s28 = sphi 0, %s27
    %s44 = sphi 0, %s28
    %s50 = sphi 0, %s52
    %s53 = sphi 0, %s50
    %s54 = sphi 0, %s53
    %s70 = sphi 0, %s54
    %s74 = sphi 0, %s74
    %s76 = sphi 0, %s74
    %s77 = sphi 0, %s76
    %s91 = sphi 0, %s77
    %s95 = sphi 0, %s95
    %s97 = sphi 0, %s95
    %s98 = sphi 0, %s97
    %s112 = sphi 0, %s98
    %s116 = sphi 0, %s116
    %s118 = sphi 0, %s116
    %s119 = sphi 0, %s118
    %s133 = sphi 0, %s119
    %s137 = sphi 0, %s137
    %s139 = sphi 0, %s137
    %s140 = sphi 0, %s139
    %s154 = sphi 0, %s140
    %s160 = sphi 0, %s162
    %s163 = sphi 0, %s160
    %s164 = sphi 0, %s163
    %s180 = sphi 0, %s164
    %s186 = sphi 0, %s188
    %s189 = sphi 0, %s186
    %s190 = sphi 0, %s189
    %s206 = sphi 0, %s190
    %s212 = sphi 0, %s214
    %s215 = sphi 0, %s212
    %s216 = sphi 0, %s215
    %s232 = sphi 0, %s216
  $region4: #{tpu_custom_call.1} parent=0 // loop_header_branch
    %17 = sbr.rel (%p15) target = $region8
  $region5: #{tpu_custom_call.1} parent=0 // loop_body
    %s19 = ssub.s32 %s14, 1
    %s20 = ssub.s32 %s14, 2
    %s21 = sadd.s32 %s14, 1
    %s22 = ssub.s32 %s14, %s21
    %p23 = scmp.eq.s32.totalorder %s22, 0
    %s25 = sadd.s32 %s24, 1
    %s26 = scalar_select %p23, %s24, %s25
    %p29 = pneg %p23
    %p30 = scmp.eq.s32.totalorder %s14, 1
    %p31 = por %p29, %p30
    %p32 = scmp.ne.s32.totalorder %s24, %s27
    %p33 = scmp.eq.s32.totalorder %s14, 0
    %p34 = por %p32, %p33
    %p35 = scmp.ne.s32.totalorder %s24, %s27
    %p36 = scmp.eq.s32.totalorder %s19, 1
    %p37 = por %p35, %p36
    %p38 = scmp.ne.s32.totalorder %s27, %s28
    %p39 = scmp.eq.s32.totalorder %s19, 0
    %p40 = por %p38, %p39
    %p41 = scmp.ne.s32.totalorder %s27, %s28
    %p42 = scmp.eq.s32.totalorder %s20, 1
    %p43 = por %p41, %p42
    %p45 = scmp.ne.s32.totalorder %s28, %s44
    %p46 = scmp.eq.s32.totalorder %s20, 0
    %p47 = por %p45, %p46
    %s48 = ssub.s32 %s14, %s21
    %p49 = scmp.eq.s32.totalorder %s48, 0
    %s51 = sadd.s32 %s50, 1
    %s52 = scalar_select %p49, %s50, %s51
    %p55 = pneg %p49
    %p56 = scmp.eq.s32.totalorder %s14, 1
    %p57 = por %p55, %p56
    %p58 = scmp.ne.s32.totalorder %s50, %s53
    %p59 = scmp.eq.s32.totalorder %s14, 0
    %p60 = por %p58, %p59
    %p61 = scmp.ne.s32.totalorder %s50, %s53
    %p62 = scmp.eq.s32.totalorder %s19, 1
    %p63 = por %p61, %p62
    %p64 = scmp.ne.s32.totalorder %s53, %s54
    %p65 = scmp.eq.s32.totalorder %s19, 0
    %p66 = por %p64, %p65
    %p67 = scmp.ne.s32.totalorder %s53, %s54
    %p68 = scmp.eq.s32.totalorder %s20, 1
    %p69 = por %p67, %p68
    %p71 = scmp.ne.s32.totalorder %s54, %s70
    %p72 = scmp.eq.s32.totalorder %s20, 0
    %p73 = por %p71, %p72
    %s75 = sadd.s32 %s74, 1
    %p78 = scmp.eq.s32.totalorder %s14, 1
    %p79 = scmp.ne.s32.totalorder %s74, %s76
    %p80 = scmp.eq.s32.totalorder %s14, 0
    %p81 = por %p79, %p80
    %p82 = scmp.ne.s32.totalorder %s74, %s76
    %p83 = scmp.eq.s32.totalorder %s19, 1
    %p84 = por %p82, %p83
    %p85 = scmp.ne.s32.totalorder %s76, %s77
    %p86 = scmp.eq.s32.totalorder %s19, 0
    %p87 = por %p85, %p86
    %p88 = scmp.ne.s32.totalorder %s76, %s77
    %p89 = scmp.eq.s32.totalorder %s20, 1
    %p90 = por %p88, %p89
    %p92 = scmp.ne.s32.totalorder %s77, %s91
    %p93 = scmp.eq.s32.totalorder %s20, 0
    %p94 = por %p92, %p93
    %s96 = sadd.s32 %s95, 1
    %p99 = scmp.eq.s32.totalorder %s14, 1
    %p100 = scmp.ne.s32.totalorder %s95, %s97
    %p101 = scmp.eq.s32.totalorder %s14, 0
    %p102 = por %p100, %p101
    %p103 = scmp.ne.s32.totalorder %s95, %s97
    %p104 = scmp.eq.s32.totalorder %s19, 1
    %p105 = por %p103, %p104
    %p106 = scmp.ne.s32.totalorder %s97, %s98
    %p107 = scmp.eq.s32.totalorder %s19, 0
    %p108 = por %p106, %p107
    %p109 = scmp.ne.s32.totalorder %s97, %s98
    %p110 = scmp.eq.s32.totalorder %s20, 1
    %p111 = por %p109, %p110
    %p113 = scmp.ne.s32.totalorder %s98, %s112
    %p114 = scmp.eq.s32.totalorder %s20, 0
    %p115 = por %p113, %p114
    %s117 = sadd.s32 %s116, 1
    %p120 = scmp.eq.s32.totalorder %s14, 1
    %p121 = scmp.ne.s32.totalorder %s116, %s118
    %p122 = scmp.eq.s32.totalorder %s14, 0
    %p123 = por %p121, %p122
    %p124 = scmp.ne.s32.totalorder %s116, %s118
    %p125 = scmp.eq.s32.totalorder %s19, 1
    %p126 = por %p124, %p125
    %p127 = scmp.ne.s32.totalorder %s118, %s119
    %p128 = scmp.eq.s32.totalorder %s19, 0
    %p129 = por %p127, %p128
    %p130 = scmp.ne.s32.totalorder %s118, %s119
    %p131 = scmp.eq.s32.totalorder %s20, 1
    %p132 = por %p130, %p131
    %p134 = scmp.ne.s32.totalorder %s119, %s133
    %p135 = scmp.eq.s32.totalorder %s20, 0
    %p136 = por %p134, %p135
    %s138 = sadd.s32 %s137, 1
    %p141 = scmp.eq.s32.totalorder %s14, 1
    %p142 = scmp.ne.s32.totalorder %s137, %s139
    %p143 = scmp.eq.s32.totalorder %s14, 0
    %p144 = por %p142, %p143
    %p145 = scmp.ne.s32.totalorder %s137, %s139
    %p146 = scmp.eq.s32.totalorder %s19, 1
    %p147 = por %p145, %p146
    %p148 = scmp.ne.s32.totalorder %s139, %s140
    %p149 = scmp.eq.s32.totalorder %s19, 0
    %p150 = por %p148, %p149
    %p151 = scmp.ne.s32.totalorder %s139, %s140
    %p152 = scmp.eq.s32.totalorder %s20, 1
    %p153 = por %p151, %p152
    %p155 = scmp.ne.s32.totalorder %s140, %s154
    %p156 = scmp.eq.s32.totalorder %s20, 0
    %p157 = por %p155, %p156
    %s158 = ssub.s32 %s14, %s21
    %p159 = scmp.eq.s32.totalorder %s158, 0
    %s161 = sadd.s32 %s160, 1
    %s162 = scalar_select %p159, %s160, %s161
    %p165 = pneg %p159
    %p166 = scmp.eq.s32.totalorder %s14, 1
    %p167 = por %p165, %p166
    %p168 = scmp.ne.s32.totalorder %s160, %s163
    %p169 = scmp.eq.s32.totalorder %s14, 0
    %p170 = por %p168, %p169
    %p171 = scmp.ne.s32.totalorder %s160, %s163
    %p172 = scmp.eq.s32.totalorder %s19, 1
    %p173 = por %p171, %p172
    %p174 = scmp.ne.s32.totalorder %s163, %s164
    %p175 = scmp.eq.s32.totalorder %s19, 0
    %p176 = por %p174, %p175
    %p177 = scmp.ne.s32.totalorder %s163, %s164
    %p178 = scmp.eq.s32.totalorder %s20, 1
    %p179 = por %p177, %p178
    %p181 = scmp.ne.s32.totalorder %s164, %s180
    %p182 = scmp.eq.s32.totalorder %s20, 0
    %p183 = por %p181, %p182
    %s184 = ssub.s32 %s14, %s21
    %p185 = scmp.eq.s32.totalorder %s184, 0
    %s187 = sadd.s32 %s186, 1
    %s188 = scalar_select %p185, %s186, %s187
    %p191 = pneg %p185
    %p192 = scmp.eq.s32.totalorder %s14, 1
    %p193 = por %p191, %p192
    %p194 = scmp.ne.s32.totalorder %s186, %s189
    %p195 = scmp.eq.s32.totalorder %s14, 0
    %p196 = por %p194, %p195
    %p197 = scmp.ne.s32.totalorder %s186, %s189
    %p198 = scmp.eq.s32.totalorder %s19, 1
    %p199 = por %p197, %p198
    %p200 = scmp.ne.s32.totalorder %s189, %s190
    %p201 = scmp.eq.s32.totalorder %s19, 0
    %p202 = por %p200, %p201
    %p203 = scmp.ne.s32.totalorder %s189, %s190
    %p204 = scmp.eq.s32.totalorder %s20, 1
    %p205 = por %p203, %p204
    %p207 = scmp.ne.s32.totalorder %s190, %s206
    %p208 = scmp.eq.s32.totalorder %s20, 0
    %p209 = por %p207, %p208
    %s210 = ssub.s32 %s14, %s21
    %p211 = scmp.eq.s32.totalorder %s210, 0
    %s213 = sadd.s32 %s212, 1
    %s214 = scalar_select %p211, %s212, %s213
    %p217 = pneg %p211
    %p218 = scmp.eq.s32.totalorder %s14, 1
    %p219 = por %p217, %p218
    %p220 = scmp.ne.s32.totalorder %s212, %s215
    %p221 = scmp.eq.s32.totalorder %s14, 0
    %p222 = por %p220, %p221
    %p223 = scmp.ne.s32.totalorder %s212, %s215
    %p224 = scmp.eq.s32.totalorder %s19, 1
    %p225 = por %p223, %p224
    %p226 = scmp.ne.s32.totalorder %s215, %s216
    %p227 = scmp.eq.s32.totalorder %s19, 0
    %p228 = por %p226, %p227
    %p229 = scmp.ne.s32.totalorder %s215, %s216
    %p230 = scmp.eq.s32.totalorder %s20, 1
    %p231 = por %p229, %p230
    %p233 = scmp.ne.s32.totalorder %s216, %s232
    %p234 = scmp.eq.s32.totalorder %s20, 0
    %p235 = por %p233, %p234
    %p236 = scmp.le.s32.totalorder 1, %s14
    %p237 = scmp.lt.s32.totalorder %s14, 3
    %p238 = pnand %p236, %p237
    %p239 = pneg %p238
    // Predicated region
    $region9: #{tpu_custom_call.1} parent=5 // pred_check
      _
    $region10: #{tpu_custom_call.1} parent=5 // pred_check_branch
      %241 = sbr.rel (%p238) target = $region12
    $region11: #{tpu_custom_call.1} parent=5 // pred_region
      %s242 = ssub.s32 %s14, 1
      // Predicated region
      $region13: #{tpu_custom_call.1} parent=11 // pred_check
        %p243 = pneg %p87
      $region14: #{tpu_custom_call.1} parent=11 // pred_check_branch
        %245 = sbr.rel (%p243) target = $region16
      $region15: #{tpu_custom_call.1} parent=11 // pred_region
        _
      $region16: #{tpu_custom_call.1} parent=11 // pred_fallthru
        _
      // Predicated region
      $region17: #{tpu_custom_call.1} parent=11 // pred_check
        %p246 = pneg %p108
      $region18: #{tpu_custom_call.1} parent=11 // pred_check_branch
        %248 = sbr.rel (%p246) target = $region20
      $region19: #{tpu_custom_call.1} parent=11 // pred_region
        _
      $region20: #{tpu_custom_call.1} parent=11 // pred_fallthru
        _
      // Predicated region
      $region21: #{tpu_custom_call.1} parent=11 // pred_check
        %p249 = pneg %p129
      $region22: #{tpu_custom_call.1} parent=11 // pred_check_branch
        %251 = sbr.rel (%p249) target = $region24
      $region23: #{tpu_custom_call.1} parent=11 // pred_region
        _
      $region24: #{tpu_custom_call.1} parent=11 // pred_fallthru
        _
      // Predicated region
      $region25: #{tpu_custom_call.1} parent=11 // pred_check
        %p252 = pneg %p150
      $region26: #{tpu_custom_call.1} parent=11 // pred_check_branch
        %254 = sbr.rel (%p252) target = $region28
      $region27: #{tpu_custom_call.1} parent=11 // pred_region
        _
      $region28: #{tpu_custom_call.1} parent=11 // pred_fallthru
        _
    $region12: #{tpu_custom_call.1} parent=5 // pred_fallthru
      _
    %p255 = scmp.lt.s32.totalorder %s14, 2
    // Predicated region
    $region29: #{tpu_custom_call.1} parent=5 // pred_check
      %p256 = pneg %p255
    $region30: #{tpu_custom_call.1} parent=5 // pred_check_branch
      %258 = sbr.rel (%p256) target = $region32
    $region31: #{tpu_custom_call.1} parent=5 // pred_region
      // Predicated region
      $region33: #{tpu_custom_call.1} parent=31 // pred_check
        %p259 = pneg %p34
      $region34: #{tpu_custom_call.1} parent=31 // pred_check_branch
        %261 = sbr.rel (%p259) target = $region36
      $region35: #{tpu_custom_call.1} parent=31 // pred_region
        %p262 = scmp.lt.s32.totalorder %s14, 1
        %s263 = scalar_select %p262, %s14, 1
        %s264 = smul.addr %s263, 4
        %s265 = smul.addr %s264, 8
        %s266 = scalar_lea.vmem %s0, %s265
      $region36: #{tpu_custom_call.1} parent=31 // pred_fallthru
        _
      // Predicated region
      $region37: #{tpu_custom_call.1} parent=31 // pred_check
        %p267 = pneg %p60
      $region38: #{tpu_custom_call.1} parent=31 // pred_check_branch
        %269 = sbr.rel (%p267) target = $region40
      $region39: #{tpu_custom_call.1} parent=31 // pred_region
        %p270 = scmp.lt.s32.totalorder %s14, 1
        %s271 = scalar_select %p270, %s14, 1
        %s272 = smul.addr %s271, 4
        %s273 = smul.addr %s272, 8
        %s274 = scalar_lea.vmem %s1, %s273
      $region40: #{tpu_custom_call.1} parent=31 // pred_fallthru
        _
      // Predicated region
      $region41: #{tpu_custom_call.1} parent=31 // pred_check
        %p275 = pneg %p170
      $region42: #{tpu_custom_call.1} parent=31 // pred_check_branch
        %277 = sbr.rel (%p275) target = $region44
      $region43: #{tpu_custom_call.1} parent=31 // pred_region
        %p278 = scmp.lt.s32.totalorder %s14, 1
        %s279 = scalar_select %p278, %s14, 1
        %s280 = smul.addr %s279, 4
        %s281 = smul.addr %s280, 8
        %s282 = scalar_lea.vmem %s6, %s281
      $region44: #{tpu_custom_call.1} parent=31 // pred_fallthru
        _
      // Predicated region
      $region45: #{tpu_custom_call.1} parent=31 // pred_check
        %p283 = pneg %p196
      $region46: #{tpu_custom_call.1} parent=31 // pred_check_branch
        %285 = sbr.rel (%p283) target = $region48
      $region47: #{tpu_custom_call.1} parent=31 // pred_region
        %p286 = scmp.lt.s32.totalorder %s14, 1
        %s287 = scalar_select %p286, %s14, 1
        %s288 = scalar_lea.vmem %s7, %s287
      $region48: #{tpu_custom_call.1} parent=31 // pred_fallthru
        _
    $region32: #{tpu_custom_call.1} parent=5 // pred_fallthru
      _
    %p289 = scmp.le.s32.totalorder 1, %s14
    %p290 = scmp.lt.s32.totalorder %s14, 3
    %p291 = pnand %p289, %p290
    %p292 = pneg %p291
    // Predicated region
    $region49: #{tpu_custom_call.1} parent=5 // pred_check
      _
    $region50: #{tpu_custom_call.1} parent=5 // pred_check_branch
      %294 = sbr.rel (%p291) target = $region52
    $region51: #{tpu_custom_call.1} parent=5 // pred_region
      %s295 = ssub.s32 %s14, 1
      %p296 = scmp.lt.s32.totalorder %s19, 1
      %s297 = scalar_select %p296, %s19, 1
      %s298 = smul.addr %s297, 4
      %s299 = smul.addr %s298, 8
      %s300 = scalar_lea.vmem %s0, %s299
      %p301 = pneg %p40
      %p302 = pneg %p37
      %p303 = scmp.lt.s32.totalorder %s19, 1
      %s304 = scalar_select %p303, %s19, 1
      %s305 = smul.addr %s304, 4
      %s306 = smul.addr %s305, 8
      %s307 = scalar_lea.vmem %s1, %s306
      %p308 = pneg %p66
      %p309 = pneg %p63
      %p310 = pneg %p87
      %p311 = pneg %p84
      %p312 = pneg %p108
      %p313 = pneg %p105
      %p314 = pneg %p129
      %p315 = pneg %p126
      %p316 = pneg %p150
      %p317 = pneg %p147
      %p318 = scmp.lt.s32.totalorder %s19, 1
      %s319 = scalar_select %p318, %s19, 1
      %s320 = smul.addr %s319, 4
      %s321 = smul.addr %s320, 8
      %s322 = scalar_lea.vmem %s6, %s321
      %p323 = pneg %p176
      %p324 = pneg %p173
      %p325 = scmp.lt.s32.totalorder %s19, 1
      %s326 = scalar_select %p325, %s19, 1
      %s327 = scalar_lea.vmem %s7, %s326
      %p328 = pneg %p202
      %p329 = pneg %p199
      %p330 = pneg %p228
      %p331 = pneg %p225
      %p332 = scmp.lt.s32.totalorder %s19, 1
      %s333 = scalar_select %p332, %s19, 1
      %s334 = smul.addr %s333, 4
      %s335 = smul.addr %s334, 8
      %s336 = scalar_lea.vmem %s8, %s335
      %p337 = scmp.lt.s32.totalorder %s19, 1
      %s338 = scalar_select %p337, %s19, 1
      %s339 = smul.addr %s338, 4
      %s340 = smul.addr %s339, 8
      %s341 = scalar_lea.vmem %s0, %s340
      %p342 = scmp.lt.s32.totalorder %s19, 1
      %s343 = scalar_select %p342, %s19, 1
      %s344 = smul.addr %s343, 4
      %s345 = smul.addr %s344, 8
      %s346 = scalar_lea.vmem %s1, %s345
      %p347 = scmp.lt.s32.totalorder %s19, 1
      %s348 = scalar_select %p347, %s19, 1
      %s349 = smul.addr %s348, 4
      %s350 = smul.addr %s349, 8
      %s351 = scalar_lea.vmem %s6, %s350
      %p352 = scmp.lt.s32.totalorder %s19, 1
      %s353 = scalar_select %p352, %s19, 1
      %s354 = scalar_lea.vmem %s7, %s353
      %p355 = scmp.lt.s32.totalorder %s19, 1
      %s356 = scalar_select %p355, %s19, 1
      %s357 = smul.addr %s356, 4
      %s358 = smul.addr %s357, 8
      %s359 = scalar_lea.vmem %s8, %s358
      %v360 = vlaneseq
      %v361 = vshrl.u32 %v360, 7
      %v362 = vadd.s32 %v361, 8
      %v363 = vadd.s32 %v361, 16
      %v364 = vadd.s32 %v361, 24
      %vm365 = vcmp.lt.s32.totalorder %v361, 0
      %v366 = vsub.s32 0, %v361
      %v367 = vsel %vm365, %v366, %v361
      %v368 = vshrl.u32 %v367, 4
      %v369 = vand.u32 %v367, 15
      %v370 = vsub.s32 0, %v369
      %v371 = vsel %vm365, %v370, %v369
      %vm372 = vcmp.lt.s32.totalorder %v362, 0
      %v373 = vsub.s32 0, %v362
      %v374 = vsel %vm372, %v373, %v362
      %v375 = vshrl.u32 %v374, 4
      %v376 = vand.u32 %v374, 15
      %v377 = vsub.s32 0, %v376
      %v378 = vsel %vm372, %v377, %v376
      %vm379 = vcmp.lt.s32.totalorder %v363, 0
      %v380 = vsub.s32 0, %v363
      %v381 = vsel %vm379, %v380, %v363
      %v382 = vshrl.u32 %v381, 4
      %v383 = vand.u32 %v381, 15
      %v384 = vsub.s32 0, %v383
      %v385 = vsel %vm379, %v384, %v383
      %vm386 = vcmp.lt.s32.totalorder %v364, 0
      %v387 = vsub.s32 0, %v364
      %v388 = vsel %vm386, %v387, %v364
      %v389 = vshrl.u32 %v388, 4
      %v390 = vand.u32 %v388, 15
      %v391 = vsub.s32 0, %v390
      %v392 = vsel %vm386, %v391, %v390
      %vm393 = vcmp.ne.s32.totalorder %v371, 0
      %vm394 = vcmp.ne.s32.totalorder %v378, 0
      %vm395 = vcmp.ne.s32.totalorder %v385, 0
      %vm396 = vcmp.ne.s32.totalorder %v392, 0
      %vm397 = vcmp.lt.s32.totalorder %v371, 0
      %vm398 = vcmp.lt.s32.totalorder %v378, 0
      %vm399 = vcmp.lt.s32.totalorder %v385, 0
      %vm400 = vcmp.lt.s32.totalorder %v392, 0
      %vm401 = vmand %vm397, %vm393
      %vm402 = vmand %vm398, %vm394
      %vm403 = vmand %vm399, %vm395
      %vm404 = vmand %vm400, %vm396
      %v405 = vadd.s32 %v371, 16
      %v406 = vadd.s32 %v378, 16
      %v407 = vadd.s32 %v385, 16
      %v408 = vadd.s32 %v392, 16
      %v409 = vsel %vm401, %v405, %v371
      %v410 = vsel %vm402, %v406, %v378
      %v411 = vsel %vm403, %v407, %v385
      %v412 = vsel %vm404, %v408, %v392
      %vm413 = vcmp.eq.s32.totalorder %v409, 0
      %vm414 = vcmp.eq.s32.totalorder %v410, 0
      %vm415 = vcmp.eq.s32.totalorder %v411, 0
      %vm416 = vcmp.eq.s32.totalorder %v412, 0
      %vm417 = vcmp.eq.s32.totalorder %v409, 15
      %vm418 = vcmp.eq.s32.totalorder %v410, 15
      %vm419 = vcmp.eq.s32.totalorder %v411, 15
      %vm420 = vcmp.eq.s32.totalorder %v412, 15
      %v421 = vld [vmem:[%s341] sm:$0xff]
      %v422 = vld [vmem:[%s341 + $0x8] sm:$0xff]
      %v423 = vld [vmem:[%s341 + $0x10] sm:$0xff]
      %v424 = vld [vmem:[%s341 + $0x18] sm:$0xff]
      %v425 = vld [vmem:[%s346] sm:$0xff]
      %v426 = vld [vmem:[%s346 + $0x8] sm:$0xff]
      %v427 = vld [vmem:[%s346 + $0x10] sm:$0xff]
      %v428 = vld [vmem:[%s346 + $0x18] sm:$0xff]
      %v429 = vld [vmem:[%s2] sm:$0xff]
      %v430 = vld [vmem:[%s2 + $0x8] sm:$0xff]
      %v431 = vld [vmem:[%s2 + $0x10] sm:$0xff]
      %v432 = vld [vmem:[%s2 + $0x18] sm:$0xff]
      %v433 = vld [vmem:[%s3] sm:$0x1]
      %vm434 = vcmask 261120
      %v436 = vsel %vm434, %v421, 0
      %v439 = vsel %vm434, %v422, 0
      %v442 = vsel %vm434, %v423, 0
      %v445 = vsel %vm434, %v424, 0
      %447 = vmatpush.msra.mxu0 0.0
      %448 = vmatpush.msra.mxu0 0.0
      %449 = vmatpush.msra.mxu0 0.0
      %450 = vmatpush.msra.mxu0 0.0
      %451 = vmatpush.msra.mxu0 0.0
      %452 = vmatpush.msra.mxu0 0.0
      %453 = vmatpush.msra.mxu0 0.0
      %454 = vmatpush.msra.mxu0 0.0
      %455 = vmatpush.msra.mxu0 0.0
      %456 = vmatpush.msra.mxu0 0.0
      %457 = vmatpush.msra.mxu0 0.0
      %458 = vmatpush.msra.mxu0 0.0
      %459 = vmatpush.msra.mxu0 %v432
      %460 = vmatpush.msra.mxu0 %v431
      %461 = vmatpush.msra.mxu0 %v430
      %462 = vmatpush.msra.mxu0 %v429
      %463 = vmatmul.f32.gmra.mxu0 %v436
      %v464 = vpop.f32.mrf.mxu0
      %v465 = vadd.f32 0.0, %v464
      %466 = vmatmul.f32.gmra.mxu0 %v439
      %v467 = vpop.f32.mrf.mxu0
      %v468 = vadd.f32 0.0, %v467
      %469 = vmatmul.f32.gmra.mxu0 %v442
      %v470 = vpop.f32.mrf.mxu0
      %v471 = vadd.f32 0.0, %v470
      %472 = vmatmul.f32.gmra.mxu0 %v445
      %v473 = vpop.f32.mrf.mxu0
      %v474 = vadd.f32 0.0, %v473
      %475 = vdwg.mxu0
      %v476 = vrot.slane %v465, 7
      %v477 = vrot.slane %v468, 7
      %v478 = vrot.slane %v471, 7
      %v479 = vrot.slane %v474, 7
      %vm480 = vcmp.lt.s32.totalorder %v361, 1
      %v481 = vsel %vm480, %v478, %v479
      %v482 = vsel %vm480, %v477, %v478
      %v483 = vsel %vm480, %v476, %v477
      %v484 = vsel %vm480, %v479, %v476
      %489 = vrot.lane.b32.xlu0 %v465, 64
      %v490 = vpop.permute.xlu0 %489
      %491 = vrot.lane.b32.xlu0 %v468, 64
      %v492 = vpop.permute.xlu0 %491
      %493 = vrot.lane.b32.xlu0 %v471, 64
      %v494 = vpop.permute.xlu0 %493
      %495 = vrot.lane.b32.xlu0 %v474, 64
      %v496 = vpop.permute.xlu0 %495
      %v501 = vrot.slane %v490, 1
      %v502 = vrot.slane %v492, 1
      %v503 = vrot.slane %v494, 1
      %v504 = vrot.slane %v496, 1
      %vm505 = vcmp.lt.s32.totalorder %v361, 7
      %v506 = vsel %vm505, %v503, %v504
      %v507 = vsel %vm505, %v502, %v503
      %v508 = vsel %vm505, %v501, %v502
      %v509 = vsel %vm505, %v504, %v501
      %v510 = vsel %vm413, 1, 0
      %v511 = vsel %vm414, 1, 0
      %v512 = vsel %vm415, 1, 0
      %v513 = vsel %vm416, 1, 0
      %vm514 = vcmp.eq.s32.totalorder %v510, 1
      %vm515 = vcmp.eq.s32.totalorder %v511, 1
      %vm516 = vcmp.eq.s32.totalorder %v512, 1
      %vm517 = vcmp.eq.s32.totalorder %v513, 1
      %v518 = vsel %vm514, 0.0, %v484
      %v519 = vsel %vm515, 0.0, %v483
      %v520 = vsel %vm516, 0.0, %v482
      %v521 = vsel %vm517, 0.0, %v481
      %v522 = vsel %vm417, 1, 0
      %v523 = vsel %vm418, 1, 0
      %v524 = vsel %vm419, 1, 0
      %v525 = vsel %vm420, 1, 0
      %vm526 = vcmp.eq.s32.totalorder %v522, 1
      %vm527 = vcmp.eq.s32.totalorder %v523, 1
      %vm528 = vcmp.eq.s32.totalorder %v524, 1
      %vm529 = vcmp.eq.s32.totalorder %v525, 1
      %v530 = vsel %vm526, 0.0, %v508
      %v531 = vsel %vm527, 0.0, %v507
      %v532 = vsel %vm528, 0.0, %v506
      %v533 = vsel %vm529, 0.0, %v509
      %534 = vrot.lane.b32.xlu0 %v465, 96
      %v535 = vpop.permute.xlu0 %534
      %536 = vrot.lane.b32.xlu0 %v468, 96
      %v537 = vpop.permute.xlu0 %536
      %538 = vrot.lane.b32.xlu0 %v471, 96
      %v539 = vpop.permute.xlu0 %538
      %540 = vrot.lane.b32.xlu0 %v474, 96
      %v541 = vpop.permute.xlu0 %540
      %v546 = vadd.f32 %v518, %v535
      %v547 = vadd.f32 %v519, %v537
      %v548 = vadd.f32 %v520, %v539
      %v549 = vadd.f32 %v521, %v541
      %v550 = vadd.f32 %v546, %v530
      %v551 = vadd.f32 %v547, %v531
      %v552 = vadd.f32 %v548, %v532
      %v553 = vadd.f32 %v549, %v533
      %v555 = vperm.slane %v433, 0
      %v557 = vadd.f32 %v550, %v555
      %v558 = vadd.f32 %v551, %v555
      %v559 = vadd.f32 %v552, %v555
      %v560 = vadd.f32 %v553, %v555
      %562 = vset.pattern.permute.xlu0 0
      %563 = vperm.xlu0 %562, %v425
      %v564 = vpop.permute.xlu0 %563
      %567 = vset.pattern.permute.xlu0 0
      %568 = vperm.xlu0 %567, %v426
      %v569 = vpop.permute.xlu0 %568
      %572 = vset.pattern.permute.xlu0 0
      %573 = vperm.xlu0 %572, %v427
      %v574 = vpop.permute.xlu0 %573
      %577 = vset.pattern.permute.xlu0 0
      %578 = vperm.xlu0 %577, %v428
      %v579 = vpop.permute.xlu0 %578
      %v581 = vmul.f32 %v557, %v564
      %v582 = vmul.f32 %v558, %v569
      %v583 = vmul.f32 %v559, %v574
      %v584 = vmul.f32 %v560, %v579
      %v585 = vmax.f32 %v581, 0.0
      %v586 = vmax.f32 %v582, 0.0
      %v587 = vmax.f32 %v583, 0.0
      %v588 = vmax.f32 %v584, 0.0
      %v589 = vld [vmem:[%s4] sm:$0xff]
      %v590 = vld [vmem:[%s4 + $0x8] sm:$0xff]
      %v591 = vld [vmem:[%s4 + $0x10] sm:$0xff]
      %v592 = vld [vmem:[%s4 + $0x18] sm:$0xff]
      %v593 = vld [vmem:[%s5] sm:$0x1]
      %v595 = vsel %vm434, %v585, 0
      %v598 = vsel %vm434, %v586, 0
      %v601 = vsel %vm434, %v587, 0
      %v604 = vsel %vm434, %v588, 0
      %606 = vmatpush.msra.mxu0 0.0
      %607 = vmatpush.msra.mxu0 0.0
      %608 = vmatpush.msra.mxu0 0.0
      %609 = vmatpush.msra.mxu0 0.0
      %610 = vmatpush.msra.mxu0 0.0
      %611 = vmatpush.msra.mxu0 0.0
      %612 = vmatpush.msra.mxu0 0.0
      %613 = vmatpush.msra.mxu0 0.0
      %614 = vmatpush.msra.mxu0 0.0
      %615 = vmatpush.msra.mxu0 0.0
      %616 = vmatpush.msra.mxu0 0.0
      %617 = vmatpush.msra.mxu0 0.0
      %618 = vmatpush.msra.mxu0 %v592
      %619 = vmatpush.msra.mxu0 %v591
      %620 = vmatpush.msra.mxu0 %v590
      %621 = vmatpush.msra.mxu0 %v589
      %622 = vmatmul.f32.gmra.mxu0 %v595
      %v623 = vpop.f32.mrf.mxu0
      %v624 = vadd.f32 0.0, %v623
      %625 = vmatmul.f32.gmra.mxu0 %v598
      %v626 = vpop.f32.mrf.mxu0
      %v627 = vadd.f32 0.0, %v626
      %628 = vmatmul.f32.gmra.mxu0 %v601
      %v629 = vpop.f32.mrf.mxu0
      %v630 = vadd.f32 0.0, %v629
      %631 = vmatmul.f32.gmra.mxu0 %v604
      %v632 = vpop.f32.mrf.mxu0
      %v633 = vadd.f32 0.0, %v632
      %634 = vdwg.mxu0
      %v635 = vrot.slane %v624, 7
      %v636 = vrot.slane %v627, 7
      %v637 = vrot.slane %v630, 7
      %v638 = vrot.slane %v633, 7
      %v639 = vsel %vm480, %v637, %v638
      %v640 = vsel %vm480, %v636, %v637
      %v641 = vsel %vm480, %v635, %v636
      %v642 = vsel %vm480, %v638, %v635
      %647 = vrot.lane.b32.xlu0 %v624, 64
      %v648 = vpop.permute.xlu0 %647
      %649 = vrot.lane.b32.xlu0 %v627, 64
      %v650 = vpop.permute.xlu0 %649
      %651 = vrot.lane.b32.xlu0 %v630, 64
      %v652 = vpop.permute.xlu0 %651
      %653 = vrot.lane.b32.xlu0 %v633, 64
      %v654 = vpop.permute.xlu0 %653
      %v659 = vrot.slane %v648, 1
      %v660 = vrot.slane %v650, 1
      %v661 = vrot.slane %v652, 1
      %v662 = vrot.slane %v654, 1
      %v663 = vsel %vm505, %v661, %v662
      %v664 = vsel %vm505, %v660, %v661
      %v665 = vsel %vm505, %v659, %v660
      %v666 = vsel %vm505, %v662, %v659
      %v667 = vsel %vm514, 0.0, %v642
      %v668 = vsel %vm515, 0.0, %v641
      %v669 = vsel %vm516, 0.0, %v640
      %v670 = vsel %vm517, 0.0, %v639
      %v671 = vsel %vm526, 0.0, %v665
      %v672 = vsel %vm527, 0.0, %v664
      %v673 = vsel %vm528, 0.0, %v663
      %v674 = vsel %vm529, 0.0, %v666
      %675 = vrot.lane.b32.xlu0 %v624, 96
      %v676 = vpop.permute.xlu0 %675
      %677 = vrot.lane.b32.xlu0 %v627, 96
      %v678 = vpop.permute.xlu0 %677
      %679 = vrot.lane.b32.xlu0 %v630, 96
      %v680 = vpop.permute.xlu0 %679
      %681 = vrot.lane.b32.xlu0 %v633, 96
      %v682 = vpop.permute.xlu0 %681
      %v687 = vadd.f32 %v667, %v676
      %v688 = vadd.f32 %v668, %v678
      %v689 = vadd.f32 %v669, %v680
      %v690 = vadd.f32 %v670, %v682
      %v691 = vadd.f32 %v687, %v671
      %v692 = vadd.f32 %v688, %v672
      %v693 = vadd.f32 %v689, %v673
      %v694 = vadd.f32 %v690, %v674
      %v696 = vperm.slane %v593, 0
      %v698 = vadd.f32 %v691, %v696
      %v699 = vadd.f32 %v692, %v696
      %v700 = vadd.f32 %v693, %v696
      %v701 = vadd.f32 %v694, %v696
      %v702 = vmul.f32 %v698, %v564
      %v703 = vmul.f32 %v699, %v569
      %v704 = vmul.f32 %v700, %v574
      %v705 = vmul.f32 %v701, %v579
      %v706 = vmax.f32 %v702, 0.0
      %v707 = vmax.f32 %v703, 0.0
      %v708 = vmax.f32 %v704, 0.0
      %v709 = vmax.f32 %v705, 0.0
      %v710 = vld [vmem:[%s351] sm:$0xff]
      %v711 = vld [vmem:[%s351 + $0x8] sm:$0xff]
      %v712 = vld [vmem:[%s351 + $0x10] sm:$0xff]
      %v713 = vld [vmem:[%s351 + $0x18] sm:$0xff]
      %v714 = vld [vmem:[%s354] sm:$0x1]
      %v716 = vsel %vm434, %v706, 0
      %v719 = vsel %vm434, %v707, 0
      %v722 = vsel %vm434, %v708, 0
      %v725 = vsel %vm434, %v709, 0
      %727 = vmatpush.msra.mxu0 0.0
      %728 = vmatpush.msra.mxu0 0.0
      %729 = vmatpush.msra.mxu0 0.0
      %730 = vmatpush.msra.mxu0 0.0
      %731 = vmatpush.msra.mxu0 0.0
      %732 = vmatpush.msra.mxu0 0.0
      %733 = vmatpush.msra.mxu0 0.0
      %734 = vmatpush.msra.mxu0 0.0
      %735 = vmatpush.msra.mxu0 0.0
      %736 = vmatpush.msra.mxu0 0.0
      %737 = vmatpush.msra.mxu0 0.0
      %738 = vmatpush.msra.mxu0 0.0
      %739 = vmatpush.msra.mxu0 %v713
      %740 = vmatpush.msra.mxu0 %v712
      %741 = vmatpush.msra.mxu0 %v711
      %742 = vmatpush.msra.mxu0 %v710
      %743 = vmatmul.f32.gmra.mxu0 %v716
      %v744 = vpop.f32.mrf.mxu0
      %v745 = vadd.f32 0.0, %v744
      %746 = vmatmul.f32.gmra.mxu0 %v719
      %v747 = vpop.f32.mrf.mxu0
      %v748 = vadd.f32 0.0, %v747
      %749 = vmatmul.f32.gmra.mxu0 %v722
      %v750 = vpop.f32.mrf.mxu0
      %v751 = vadd.f32 0.0, %v750
      %752 = vmatmul.f32.gmra.mxu0 %v725
      %v753 = vpop.f32.mrf.mxu0
      %v754 = vadd.f32 0.0, %v753
      %755 = vdwg.mxu0
      %v756 = vrot.slane %v745, 7
      %v757 = vrot.slane %v748, 7
      %v758 = vrot.slane %v751, 7
      %v759 = vrot.slane %v754, 7
      %v760 = vsel %vm480, %v758, %v759
      %v761 = vsel %vm480, %v757, %v758
      %v762 = vsel %vm480, %v756, %v757
      %v763 = vsel %vm480, %v759, %v756
      %768 = vrot.lane.b32.xlu0 %v745, 124
      %v769 = vpop.permute.xlu0 %768
      %770 = vrot.lane.b32.xlu0 %v748, 124
      %v771 = vpop.permute.xlu0 %770
      %772 = vrot.lane.b32.xlu0 %v751, 124
      %v773 = vpop.permute.xlu0 %772
      %774 = vrot.lane.b32.xlu0 %v754, 124
      %v775 = vpop.permute.xlu0 %774
      %v780 = vrot.slane %v769, 1
      %v781 = vrot.slane %v771, 1
      %v782 = vrot.slane %v773, 1
      %v783 = vrot.slane %v775, 1
      %v784 = vsel %vm505, %v782, %v783
      %v785 = vsel %vm505, %v781, %v782
      %v786 = vsel %vm505, %v780, %v781
      %v787 = vsel %vm505, %v783, %v780
      %v788 = vsel %vm514, 0.0, %v763
      %v789 = vsel %vm515, 0.0, %v762
      %v790 = vsel %vm516, 0.0, %v761
      %v791 = vsel %vm517, 0.0, %v760
      %v792 = vsel %vm526, 0.0, %v786
      %v793 = vsel %vm527, 0.0, %v785
      %v794 = vsel %vm528, 0.0, %v784
      %v795 = vsel %vm529, 0.0, %v787
      %796 = vrot.lane.b32.xlu0 %v745, 126
      %v797 = vpop.permute.xlu0 %796
      %798 = vrot.lane.b32.xlu0 %v748, 126
      %v799 = vpop.permute.xlu0 %798
      %800 = vrot.lane.b32.xlu0 %v751, 126
      %v801 = vpop.permute.xlu0 %800
      %802 = vrot.lane.b32.xlu0 %v754, 126
      %v803 = vpop.permute.xlu0 %802
      %v808 = vadd.f32 %v788, %v797
      %v809 = vadd.f32 %v789, %v799
      %v810 = vadd.f32 %v790, %v801
      %v811 = vadd.f32 %v791, %v803
      %v812 = vadd.f32 %v808, %v792
      %v813 = vadd.f32 %v809, %v793
      %v814 = vadd.f32 %v810, %v794
      %v815 = vadd.f32 %v811, %v795
      %v817 = vperm.slane %v714, 0
      %v819 = vadd.f32 %v812, %v817
      %v820 = vadd.f32 %v813, %v817
      %v821 = vadd.f32 %v814, %v817
      %v822 = vadd.f32 %v815, %v817
      %v823 = vmul.f32 %v819, %v564
      %v824 = vmul.f32 %v820, %v569
      %v825 = vmul.f32 %v821, %v574
      %v826 = vmul.f32 %v822, %v579
      %v827 = vmax.f32 %v823, 0.0
      %v828 = vmax.f32 %v824, 0.0
      %v829 = vmax.f32 %v825, 0.0
      %v830 = vmax.f32 %v826, 0.0
      %vm831 = vcmask 15360
      %832 = vst.msk [vmem:[%s359] sm:$0xff] %vm831, %v827
      %833 = vst.msk [vmem:[%s359 + $0x8] sm:$0xff] %vm831, %v828
      %834 = vst.msk [vmem:[%s359 + $0x10] sm:$0xff] %vm831, %v829
      %835 = vst.msk [vmem:[%s359 + $0x18] sm:$0xff] %vm831, %v830
      %p836 = scmp.lt.s32.totalorder %s19, 1
      %s837 = scalar_select %p836, %s19, 1
      %s838 = smul.addr %s837, 4
      %s839 = smul.addr %s838, 8
      %s840 = scalar_lea.vmem %s8, %s839
      // Predicated region
      $region53: #{tpu_custom_call.1} parent=51 // pred_check
        %p841 = pneg %p225
      $region54: #{tpu_custom_call.1} parent=51 // pred_check_branch
        %843 = sbr.rel (%p841) target = $region56
      $region55: #{tpu_custom_call.1} parent=51 // pred_region
        _
      $region56: #{tpu_custom_call.1} parent=51 // pred_fallthru
        _
    $region52: #{tpu_custom_call.1} parent=5 // pred_fallthru
      _
    %p844 = scmp.le.s32.totalorder 2, %s14
    // Predicated region
    $region57: #{tpu_custom_call.1} parent=5 // pred_check
      %p845 = pneg %p844
    $region58: #{tpu_custom_call.1} parent=5 // pred_check_branch
      %847 = sbr.rel (%p845) target = $region60
    $region59: #{tpu_custom_call.1} parent=5 // pred_region
      %s848 = ssub.s32 %s14, 2
      // Predicated region
      $region61: #{tpu_custom_call.1} parent=59 // pred_check
        %p849 = pneg %p231
      $region62: #{tpu_custom_call.1} parent=59 // pred_check_branch
        %851 = sbr.rel (%p849) target = $region64
      $region63: #{tpu_custom_call.1} parent=59 // pred_region
        %p852 = scmp.lt.s32.totalorder %s20, 1
        %s853 = scalar_select %p852, %s20, 1
        %s854 = smul.addr %s853, 4
        %s855 = smul.addr %s854, 8
        %s856 = scalar_lea.vmem %s8, %s855
      $region64: #{tpu_custom_call.1} parent=59 // pred_fallthru
        _
    $region60: #{tpu_custom_call.1} parent=5 // pred_fallthru
      _
  $region6: #{tpu_custom_call.1} parent=0 // loop_footer
    %s18 = sadd.s32 1, %s14
  $region7: #{tpu_custom_call.1} parent=0 // loop_footer_branch
    %13 = sbr.rel target = $region3
  $region8: #{tpu_custom_call.1} parent=0 // loop_exit
    _

</llo_original>
